<compile_context>
chip_gen: v7x
topology: tpu7x:2x2x1
jax: 0.10.0
libtpu: 0.0.40
codegen_flags: <defaults>
</compile_context>

<pallas_src>
import functools

import jax
import jax.numpy as jnp
import numpy as np
from jax import lax
from jax.experimental import pallas as pl
from jax.experimental.pallas import tpu as pltpu

LANE = 128                     # TPU lane width.
SHALLOW_CIN_LIMIT = 2 * LANE   # use the im2col GEMM path when K*K*Cin <= this (or K==1).


def _round_up(x, m):
    return (x + m - 1) // m * m


def _device_kind():
    try:
        return jax.devices()[0].device_kind.lower()
    except Exception:
        return ""


def _vmem_capacity_bytes():
    # Generation-aware VMEM capacity (review item: don't cap at 32 MiB on v5e/v6e,
    # don't assume 128 MiB on v7x).
    try:
        cap = getattr(pltpu.get_tpu_info(), "vmem_capacity_bytes", None)
        if cap:
            return int(cap)
    except Exception:
        pass
    kind = _device_kind()
    if "v7" in kind:
        return 64 * 2 ** 20          # v7x: 64 MiB per TensorCore
    return 128 * 2 ** 20             # v5e / v6e


def _is_v5e():
    kind = _device_kind()
    return ("v5 lite" in kind) or ("v5e" in kind) or ("v5litepod" in kind)


def _pick_tc(cout):
    # v6e/v7x MXU is 2x256x256 -> use 256-wide Cout tiles when the layer is wide enough;
    # v5e MXU is 4x128x128 -> keep 128.
    if (not _is_v5e()) and cout > LANE:
        return 2 * LANE
    return LANE


# --------------------------------------------------------------------------------------
# Path A: shallow Cin (and all 1x1 convs) — wrapper-side im2col + single GEMM per tile.
# --------------------------------------------------------------------------------------
def _gemm_bn_relu_kernel(p_ref, w_ref, scale_ref, shift_ref, o_ref):
    """p_ref: (TM, Kd) bf16 im2col rows; w_ref: (Kd, TC) bf16; scale/shift: (1, TC) f32."""
    acc = jnp.dot(p_ref[...], w_ref[...], preferred_element_type=jnp.float32)
    y = acc * scale_ref[...] + shift_ref[...]
    o_ref[...] = jnp.maximum(y, 0.0).astype(o_ref.dtype)


def _shallow_conv_im2col(x_nhwc, weight_oihw, scale_p, shift_p, *,
                         N, Cin, K, padding, Ho, Wo, Cout, Cout_p, TC, n_c):
    Kd = K * K * Cin
    M = N * Ho * Wo

    x_sp = jnp.pad(x_nhwc, ((0, 0), (padding, padding), (padding, padding), (0, 0)))

    # im2col: (N*Ho*Wo, K*K*Cin) bf16 — dense, NOT padded to 128 channels in HBM.
    taps = [lax.slice(x_sp, (0, kh, kw, 0), (N, kh + Ho, kw + Wo, Cin))
            for kh in range(K) for kw in range(K)]
    patches = jnp.stack(taps, axis=3).reshape(M, Kd)

    # Weights: OIHW -> (K*K*Cin, Cout_p) bf16, tap ordering matching `patches`.
    w = jnp.transpose(weight_oihw, (2, 3, 1, 0)).astype(jnp.bfloat16)     # (K,K,Cin,Cout)
    w = jnp.pad(w, ((0, 0), (0, 0), (0, 0), (0, Cout_p - Cout))).reshape(Kd, Cout_p)

    # M tiling: TM multiple of 8, >= 256 when possible (fills the MXU M dim and
    # amortizes the ~0.35us/step grid overhead); rows padded, sliced off afterwards.
    TM = min(512, _round_up(M, 8))
    M_p = _round_up(M, TM)
    n_m = M_p // TM
    patches = jnp.pad(patches, ((0, M_p - M), (0, 0)))

    needed = 2 * (TM * Kd * 2 + Kd * TC * 2 + TM * TC * 2 + 2 * TC * 4)
    vmem_limit = int(min(0.8 * _vmem_capacity_bytes(), max(4 * needed, 32 * 2 ** 20)))

    cost = pl.CostEstimate(
        flops=2 * M * Kd * Cout_p, transcendentals=0,
        bytes_accessed=M_p * Kd * 2 + Kd * Cout_p * 2 + M_p * Cout_p * 2 + 2 * Cout_p * 4)

    out = pl.pallas_call(
        _gemm_bn_relu_kernel,
        out_shape=jax.ShapeDtypeStruct((M_p, Cout_p), jnp.bfloat16),
        grid=(n_m, n_c),
        in_specs=[
            pl.BlockSpec((TM, Kd), lambda i, j: (i, 0)),
            pl.BlockSpec((Kd, TC), lambda i, j: (0, j)),
            pl.BlockSpec((1, TC), lambda i, j: (0, j)),
            pl.BlockSpec((1, TC), lambda i, j: (0, j)),
        ],
        out_specs=pl.BlockSpec((TM, TC), lambda i, j: (i, j)),
        compiler_params=pltpu.CompilerParams(
            dimension_semantics=("parallel", "parallel"),
            vmem_limit_bytes=vmem_limit),
        cost_estimate=cost,
    )(patches, w, scale_p, shift_p)

    return out[:M].reshape(N, Ho, Wo, Cout_p)


# --------------------------------------------------------------------------------------
# Path B: deep Cin — NHWC halo window, double-buffered DMA, K*K shifted matmuls.
# --------------------------------------------------------------------------------------
def _halo_conv_bn_relu_kernel(x_hbm, w_ref, scale_ref, shift_ref, o_ref,
                              xwin, dma_sem, *, TH, Wo, K, n_h, total_nh,
                              weights_resident):
    """One grid step: produce a (1, TH, Wo, TC) output tile.

    x_hbm:  (N, Ho_p+K-1, Wp, Cin_p) padded bf16 input, left in HBM (pl.ANY)
    w_ref:  (n_c | 1, K, K, Cin_p, TC) bf16 weights (fully resident in VMEM when small)
    scale_ref/shift_ref: (1, TC) folded BN scale/shift (f32)
    o_ref:  (1, TH, Wo, TC) bf16 output tile
    xwin:   (2, TH+K-1, Wp, Cin_p) double-buffered halo-window scratch
    dma_sem: (2,) DMA semaphores
    """
    n = pl.program_id(0)
    h = pl.program_id(1)
    c = pl.program_id(2)

    flat = n * n_h + h          # row-major flat index over the (batch, row-tile) axes
    slot = flat % 2

    def window_copy(flat_idx, slot_idx):
        nn = flat_idx // n_h
        hh = flat_idx % n_h
        return pltpu.make_async_copy(
            x_hbm.at[nn, pl.ds(hh * TH, TH + K - 1)], xwin.at[slot_idx],
            dma_sem.at[slot_idx])

    # Once per (n, h): wait for the current window (prefetched by the previous (n, h)
    # step, except the very first which is primed here) and start the prefetch of the
    # NEXT window so its DMA hides behind this Cout sweep.  Requires the grid to run
    # sequentially in row-major order (all axes "arbitrary").
    @pl.when(c == 0)
    def _():
        @pl.when(flat == 0)
        def _():
            window_copy(flat, slot).start()       # only exposed DMA of the whole grid

        window_copy(flat, slot).wait()

        @pl.when(flat + 1 < total_nh)
        def _():
            window_copy(flat + 1, 1 - slot).start()

    win = xwin.at[slot]
    cin_p = xwin.shape[-1]
    tc = o_ref.shape[-1]

    # Direct conv (stride=1) as K*K shifted matmuls: bf16 MXU operands, f32 register
    # accumulation (no per-tap VMEM read-modify-write of an accumulator scratch).
    # TODO(synk): the kw-shifted flatten still relayouts when Wo % 8 != 0; an in-VMEM
    #             im2col built once at c == 0 would amortize that across the Cout sweep.
    acc = jnp.zeros((TH * Wo, tc), jnp.float32)
    for kh in range(K):
        for kw in range(K):
            patch = win[pl.ds(kh, TH), pl.ds(kw, Wo), :].reshape(TH * Wo, cin_p)
            w_kk = w_ref[c, kh, kw] if weights_resident else w_ref[0, kh, kw]
            acc = acc + jnp.dot(patch, w_kk, preferred_element_type=jnp.float32)

    # Fused folded-BatchNorm (inference) + ReLU epilogue; single lane-dense bf16 store.
    y = jnp.maximum(acc * scale_ref[...] + shift_ref[...], 0.0)
    o_ref[0] = y.reshape(TH, Wo, tc).astype(o_ref.dtype)


def _deep_conv_halo(x_nhwc, weight_oihw, scale_p, shift_p, *,
                    N, Cin, K, padding, Wp, Ho, Wo, Cout, Cout_p, TC, n_c):
    Cin_p = _round_up(Cin, LANE)
    capacity = _vmem_capacity_bytes()
    budget = int(0.5 * capacity)

    # Hold the whole (reordered) weight tensor resident in VMEM when it fits, so it is
    # DMA'd once instead of once per grid step (review: weight re-DMA on deep layers).
    w_total_bytes = K * K * Cin_p * Cout_p * 2
    weights_resident = w_total_bytes <= min(8 * 2 ** 20, budget // 4)

    def _need(th):
        win = 2 * (th + K - 1) * Wp * Cin_p * 2                    # double-buffered window
        wgt = 2 * (w_total_bytes if weights_resident else K * K * Cin_p * TC * 2)
        out = 2 * th * Wo * TC * 2                                 # bf16 output blocks
        acc = th * Wo * TC * 4                                     # f32 accumulator
        return win + wgt + out + acc + 4 * TC * 4

    # Row tile targets M = TH*Wo >= 256; shrink until it fits the VMEM budget.
    TH = max(1, min(Ho, -(-256 // Wo)))
    while TH > 1 and _need(TH) > budget:
        TH = max(1, TH // 2)
    n_h = -(-Ho // TH)
    Ho_p = n_h * TH

    # Spatial + channel zero padding; extra bottom rows so the last halo window is
    # in-bounds (padded output rows are sliced off below).
    # TODO(synk): keeping the model NHWC end-to-end would let this pad live in-kernel.
    x_pad = jnp.pad(x_nhwc, ((0, 0), (padding, Ho_p - Ho + padding),
                             (padding, padding), (0, Cin_p - Cin)))

    # Weights: OIHW -> (n_c, K, K, Cin_p, TC) bf16 so the kernel selects the Cout tile
    # with a cheap leading-dim index.
    w = jnp.transpose(weight_oihw, (2, 3, 1, 0)).astype(jnp.bfloat16)    # (K,K,Cin,Cout)
    w = jnp.pad(w, ((0, 0), (0, 0), (0, Cin_p - Cin), (0, Cout_p - Cout)))
    w = w.reshape(K, K, Cin_p, n_c, TC).transpose(3, 0, 1, 2, 4)         # (n_c,K,K,Cin_p,TC)

    if weights_resident:
        w_spec = pl.BlockSpec((n_c, K, K, Cin_p, TC), lambda n, h, c: (0, 0, 0, 0, 0))
    else:
        w_spec = pl.BlockSpec((1, K, K, Cin_p, TC), lambda n, h, c: (c, 0, 0, 0, 0))

    kernel = functools.partial(_halo_conv_bn_relu_kernel, TH=TH, Wo=Wo, K=K,
                               n_h=n_h, total_nh=N * n_h,
                               weights_resident=weights_resident)

    vmem_limit = int(min(0.8 * capacity, max(2 * _need(TH), 32 * 2 ** 20)))

    cost = pl.CostEstimate(
        flops=2 * N * Ho_p * Wo * K * K * Cin_p * Cout_p,
        transcendentals=0,
        bytes_accessed=(N * n_h * (TH + K - 1) * Wp * Cin_p * 2
                        + K * K * Cin_p * Cout_p * 2
                        + N * Ho_p * Wo * Cout_p * 2))

    out = pl.pallas_call(
        kernel,
        out_shape=jax.ShapeDtypeStruct((N, Ho_p, Wo, Cout_p), jnp.bfloat16),
        grid_spec=pltpu.PrefetchScalarGridSpec(
            num_scalar_prefetch=0,
            grid=(N, n_h, n_c),
            in_specs=[
                pl.BlockSpec(memory_space=pl.ANY),   # input stays in HBM; manual halo DMA
                w_spec,
                pl.BlockSpec((1, TC), lambda n, h, c: (0, c)),
                pl.BlockSpec((1, TC), lambda n, h, c: (0, c)),
            ],
            out_specs=pl.BlockSpec((1, TH, Wo, TC), lambda n, h, c: (n, h, 0, c)),
            scratch_shapes=[
                pltpu.VMEM((2, TH + K - 1, Wp, Cin_p), jnp.bfloat16),  # 2x halo windows
                pltpu.SemaphoreType.DMA((2,)),
            ],
        ),
        # NOTE: the cross-grid-step window prefetch relies on sequential row-major grid
        # order, so ALL axes are "arbitrary" (the Cout axis must stay innermost).
        # TODO(synk): for v7x's 2 TensorCores add a parallel Wo-column axis instead.
        compiler_params=pltpu.CompilerParams(
            dimension_semantics=("arbitrary", "arbitrary", "arbitrary"),
            vmem_limit_bytes=vmem_limit),
        cost_estimate=cost,
    )(x_pad, w, scale_p, shift_p)

    return out[:, :Ho]


# --------------------------------------------------------------------------------------
# Public wrapper
# --------------------------------------------------------------------------------------
def basic_conv2d(x_nchw, weight_oihw, gamma, beta, running_mean, running_var,
                 *, stride=1, padding=0, dilation=1, groups=1, eps=1e-5):
    """BasicConv2d forward: Conv2d(bias=False) -> BatchNorm2d (inference) -> ReLU.

    NCHW float32 in/out like PyTorch.  Only stride=1, dilation=1, groups=1 (what
    DEFNet's BasicConv2d uses) are implemented.
    """
    assert stride == 1 and dilation == 1 and groups == 1, (
        "TODO(synk): only stride=1, dilation=1, groups=1 are implemented")

    N, Cin, H, W = x_nchw.shape
    Cout, Cin_w, K, Kw = weight_oihw.shape
    assert Cin == Cin_w and K == Kw

    Hp, Wp = H + 2 * padding, W + 2 * padding
    Ho, Wo = Hp - K + 1, Wp - K + 1
    assert Ho >= 1 and Wo >= 1

    # Fold BatchNorm running stats into per-channel scale/shift (applied in f32).
    scale = gamma.astype(jnp.float32) / jnp.sqrt(running_var.astype(jnp.float32) + eps)
    shift = beta.astype(jnp.float32) - running_mean.astype(jnp.float32) * scale

    TC = _pick_tc(Cout)
    Cout_p = _round_up(Cout, TC)
    n_c = Cout_p // TC
    scale_p = jnp.pad(scale, (0, Cout_p - Cout)).reshape(1, Cout_p)
    shift_p = jnp.pad(shift, (0, Cout_p - Cout)).reshape(1, Cout_p)

    # NCHW -> NHWC (bf16 MXU operands).
    # TODO(synk): an NHWC end-to-end model would remove these wrapper transposes.
    x_nhwc = jnp.transpose(x_nchw, (0, 2, 3, 1)).astype(jnp.bfloat16)

    if K == 1 or K * K * Cin <= SHALLOW_CIN_LIMIT:
        out_nhwc = _shallow_conv_im2col(
            x_nhwc, weight_oihw, scale_p, shift_p, N=N, Cin=Cin, K=K, padding=padding,
            Ho=Ho, Wo=Wo, Cout=Cout, Cout_p=Cout_p, TC=TC, n_c=n_c)
    else:
        out_nhwc = _deep_conv_halo(
            x_nhwc, weight_oihw, scale_p, shift_p, N=N, Cin=Cin, K=K, padding=padding,
            Wp=Wp, Ho=Ho, Wo=Wo, Cout=Cout, Cout_p=Cout_p, TC=TC, n_c=n_c)

    # Drop channel padding, NHWC -> NCHW, back to f32 to match the PyTorch module.
    return jnp.transpose(out_nhwc[..., :Cout], (0, 3, 1, 2)).astype(jnp.float32)


def _reference(x_nchw, weight_oihw, gamma, beta, running_mean, running_var,
               *, padding=0, eps=1e-5):
    # Matched-precision reference: bf16 conv operands, f32 accumulation, f32 BN + ReLU.
    y = lax.conv_general_dilated(
        x_nchw.astype(jnp.bfloat16), weight_oihw.astype(jnp.bfloat16),
        window_strides=(1, 1), padding=[(padding, padding)] * 2,
        dimension_numbers=("NCHW", "OIHW", "NCHW"),
        preferred_element_type=jnp.float32)
    scale = gamma.astype(jnp.float32) / jnp.sqrt(running_var.astype(jnp.float32) + eps)
    shift = beta.astype(jnp.float32) - running_mean.astype(jnp.float32) * scale
    y = y * scale[None, :, None, None] + shift[None, :, None, None]
    return jnp.maximum(y, 0.0)


if __name__ == "__main__":
    key = jax.random.PRNGKey(0)

    def make_inputs(k, N, Cin, H, W, Cout, K):
        ks = jax.random.split(k, 6)
        x = jax.random.normal(ks[0], (N, Cin, H, W), dtype=jnp.float32)
        w = jax.random.normal(ks[1], (Cout, Cin, K, K), dtype=jnp.float32) * 0.1
        gamma = jax.random.uniform(ks[2], (Cout,), minval=0.5, maxval=1.5)
        beta = jax.random.normal(ks[3], (Cout,)) * 0.1
        mean = jax.random.normal(ks[4], (Cout,)) * 0.1
        var = jax.random.uniform(ks[5], (Cout,), minval=0.5, maxval=1.5)
        return x, w, gamma, beta, mean, var

    k1, k2, k3 = jax.random.split(key, 3)

    # Config 1 (shallow / im2col GEMM path): BasicConv2d(4, 8, 3, padding=1), 2x4x16x16.
    args1 = make_inputs(k1, N=2, Cin=4, H=16, W=16, Cout=8, K=3)
    out1 = jax.block_until_ready(basic_conv2d(*args1, padding=1))
    np.testing.assert_allclose(np.asarray(out1),
                               np.asarray(_reference(*args1, padding=1)),
                               rtol=2e-2, atol=2e-2)

    # Config 2 (shallow path; Cout padding/tiling, rows not a multiple of 512): Cin=3.
    args2 = make_inputs(k2, N=1, Cin=3, H=20, W=20, Cout=160, K=3)
    out2 = jax.block_until_ready(basic_conv2d(*args2, padding=1))
    np.testing.assert_allclose(np.asarray(out2),
                               np.asarray(_reference(*args2, padding=1)),
                               rtol=2e-2, atol=2e-2)

    # Config 3 (deep path: halo window, double-buffered DMA, resident weights, row-tile
    # padding): Cin=128, Cout=256, 2x128x20x20 -> 2 batches x 2 row tiles.
    args3 = make_inputs(k3, N=2, Cin=128, H=20, W=20, Cout=256, K=3)
    out3 = jax.block_until_ready(basic_conv2d(*args3, padding=1))
    np.testing.assert_allclose(np.asarray(out3),
                               np.asarray(_reference(*args3, padding=1)),
                               rtol=2e-2, atol=2e-2)

    print("KERNEL_OK")
</pallas_src>

<mosaic_0001>
module attributes {stable_mosaic.version = 11 : i64} {
  func.func @_gemm_bn_relu_kernel(%arg0: i32, %arg1: i32, %arg2: memref<512x36xbf16, #tpu.memory_space<vmem>>, %arg3: memref<36x128xbf16, #tpu.memory_space<vmem>>, %arg4: memref<1x128xf32, #tpu.memory_space<vmem>>, %arg5: memref<1x128xf32, #tpu.memory_space<vmem>>, %arg6: memref<512x128xbf16, #tpu.memory_space<vmem>>) attributes {dimension_semantics = [#tpu.dimension_semantics<parallel>, #tpu.dimension_semantics<parallel>], iteration_bounds = array<i64: 1, 1>, scalar_prefetch = 0 : i64, scratch_operands = 0 : i64, tpu.core_type = #tpu.core_type<tc>, window_params = [{transform_indices = @transform_0, window_bounds = array<i64: 512, 36>}, {transform_indices = @transform_1, window_bounds = array<i64: 36, 128>}, {transform_indices = @transform_2, window_bounds = array<i64: 1, 128>}, {transform_indices = @transform_3, window_bounds = array<i64: 1, 128>}, {transform_indices = @transform_4, window_bounds = array<i64: 512, 128>}]} {
    %c0 = arith.constant 0 : index
    %c0_0 = arith.constant 0 : index
    %0 = vector.load %arg2[%c0, %c0_0] : memref<512x36xbf16, #tpu.memory_space<vmem>>, vector<512x36xbf16>
    %c0_1 = arith.constant 0 : index
    %c0_2 = arith.constant 0 : index
    %1 = vector.load %arg3[%c0_1, %c0_2] : memref<36x128xbf16, #tpu.memory_space<vmem>>, vector<36x128xbf16>
    %cst = arith.constant dense<0.000000e+00> : vector<512x128xf32>
    %2 = tpu.matmul %0, %1, %cst {dimension_numbers = #tpu.dot_dimension_numbers<[1], [0], [0], [1], [0, 0, 1, 1], [], []>} : vector<512x36xbf16>, vector<36x128xbf16>, vector<512x128xf32> -> vector<512x128xf32>
    %c0_3 = arith.constant 0 : index
    %c0_4 = arith.constant 0 : index
    %3 = vector.load %arg4[%c0_3, %c0_4] : memref<1x128xf32, #tpu.memory_space<vmem>>, vector<1x128xf32>
    %4 = vector.broadcast %3 : vector<1x128xf32> to vector<512x128xf32>
    %5 = arith.mulf %2, %4 : vector<512x128xf32>
    %c0_5 = arith.constant 0 : index
    %c0_6 = arith.constant 0 : index
    %6 = vector.load %arg5[%c0_5, %c0_6] : memref<1x128xf32, #tpu.memory_space<vmem>>, vector<1x128xf32>
    %7 = vector.broadcast %6 : vector<1x128xf32> to vector<512x128xf32>
    %8 = arith.addf %5, %7 : vector<512x128xf32>
    %cst_7 = arith.constant 0.000000e+00 : f32
    %9 = vector.broadcast %cst_7 : f32 to vector<512x128xf32>
    %10 = arith.maximumf %8, %9 : vector<512x128xf32>
    %11 = arith.truncf %10 : vector<512x128xf32> to vector<512x128xbf16>
    %c0_8 = arith.constant 0 : index
    %c0_9 = arith.constant 0 : index
    %12 = vector.load %arg6[%c0_8, %c0_9] : memref<512x128xbf16, #tpu.memory_space<vmem>>, vector<512x128xbf16>
    tpu.vector_store %arg6[%c0_8, %c0_9], %11 {strides = array<i32>} : memref<512x128xbf16, #tpu.memory_space<vmem>>, vector<512x128xbf16>,
    return
  }
  func.func @transform_0(%arg0: i32, %arg1: i32) -> (i32, i32) {
    %c0_i32 = arith.constant 0 : i32
    %c0_i32_0 = arith.constant 0 : i32
    return %arg0, %c0_i32 : i32, i32
  }
  func.func @transform_1(%arg0: i32, %arg1: i32) -> (i32, i32) {
    %c0_i32 = arith.constant 0 : i32
    %c0_i32_0 = arith.constant 0 : i32
    return %c0_i32, %arg1 : i32, i32
  }
  func.func @transform_2(%arg0: i32, %arg1: i32) -> (i32, i32) {
    %c0_i32 = arith.constant 0 : i32
    %c0_i32_0 = arith.constant 0 : i32
    return %c0_i32, %arg1 : i32, i32
  }
  func.func @transform_3(%arg0: i32, %arg1: i32) -> (i32, i32) {
    %c0_i32 = arith.constant 0 : i32
    %c0_i32_0 = arith.constant 0 : i32
    return %c0_i32, %arg1 : i32, i32
  }
  func.func @transform_4(%arg0: i32, %arg1: i32) -> (i32, i32) {
    %c0_i32 = arith.constant 0 : i32
    return %arg0, %arg1 : i32, i32
  }
}

</mosaic_0001>

<llo_original>
// kernel: tpu_custom_call.1
$region0: #{tpu_custom_call.1}
  #allocation0 [shape = 'u32[]', space=smem, size = 0x4, offset = 0x4, fixed_abs, tag = 'smem constant byte address 0x4 - core index']
  #allocation1 [shape = 'u32[144,128]{1,0:T(1,128)}', space=vmem, size = 0x12000, scoped, tag = 'internal scratch']
  %s0 = inlined_call_operand.vmem [shape: bf16[512,36], index: 0, kind: input, shape index: {}]
  %s1 = inlined_call_operand.vmem [shape: bf16[36,128], index: 1, kind: input, shape index: {}]
  %s2 = inlined_call_operand.vmem [shape: f32[1,128], index: 2, kind: input, shape index: {}]
  %s3 = inlined_call_operand.vmem [shape: f32[1,128], index: 3, kind: input, shape index: {}]
  %s4 = inlined_call_operand.hbm [shape: bf16[512,128], index: 4, kind: output, shape index: {}]
  %s5 = sld [smem:[#allocation0]]
  $region26: #{tpu_custom_call.1} parent=0
    _
  %s7 = ssub.s32 1, %s5
  %s8 = scalar_select 0, %s7, %s5
  $region1: #{tpu_custom_call.1} parent=0
    #allocation2 [shape = 'u8[131072]{0}', space=vmem, size = 0x20000, scoped, tag = 'output window, operand 0, single buffered']
    #allocation3 [shape = 's32[1]{0}', space=sflag, size = 0x4, scoped, tag = 'scoped memory for tpu_custom_call.1']
    %9 = vsyncpa [#allocation3], 0
    // Predicated region
    $region2: #{tpu_custom_call.1} parent=1 // pred_check
      _
    $region3: #{tpu_custom_call.1} parent=1 // pred_check_branch
      %11 = sbr.rel (0) target = $region5
    $region4: #{tpu_custom_call.1} parent=1 // pred_region
      _
    $region5: #{tpu_custom_call.1} parent=1 // pred_fallthru
      _
    // Predicated region
    $region6: #{tpu_custom_call.1} parent=1 // pred_check
      _
    $region7: #{tpu_custom_call.1} parent=1 // pred_check_branch
      %13 = sbr.rel (0) target = $region9
    $region8: #{tpu_custom_call.1} parent=1 // pred_region
      _
    $region9: #{tpu_custom_call.1} parent=1 // pred_fallthru
      _
    // Predicated region
    $region10: #{tpu_custom_call.1} parent=1 // pred_check
      _
    $region11: #{tpu_custom_call.1} parent=1 // pred_check_branch
      %15 = sbr.rel (0) target = $region13
    $region12: #{tpu_custom_call.1} parent=1 // pred_region
      _
    $region13: #{tpu_custom_call.1} parent=1 // pred_fallthru
      _
    // Predicated region
    $region14: #{tpu_custom_call.1} parent=1 // pred_check
      _
    $region15: #{tpu_custom_call.1} parent=1 // pred_check_branch
      %17 = sbr.rel (0) target = $region17
    $region16: #{tpu_custom_call.1} parent=1 // pred_region
      _
    $region17: #{tpu_custom_call.1} parent=1 // pred_fallthru
      _
    %v19 = vld [vmem:[%s0] sm:$0xf]
    %v20 = vld [vmem:[%s0 + $0x4] sm:$0xf]
    %v21 = vld [vmem:[%s0 + $0x8] sm:$0xf]
    %v22 = vld [vmem:[%s0 + $0xc] sm:$0xf]
    %v23 = vld [vmem:[%s0 + $0x10] sm:$0xf]
    %v24 = vld [vmem:[%s0 + $0x14] sm:$0xf]
    %v25 = vld [vmem:[%s0 + $0x18] sm:$0xf]
    %v26 = vld [vmem:[%s0 + $0x1c] sm:$0xf]
    %v27 = vld [vmem:[%s0 + $0x20] sm:$0xf]
    %v28 = vld [vmem:[%s0 + $0x24] sm:$0xf]
    %v29 = vld [vmem:[%s0 + $0x28] sm:$0xf]
    %v30 = vld [vmem:[%s0 + $0x2c] sm:$0xf]
    %v31 = vld [vmem:[%s0 + $0x30] sm:$0xf]
    %v32 = vld [vmem:[%s0 + $0x34] sm:$0xf]
    %v33 = vld [vmem:[%s0 + $0x38] sm:$0xf]
    %v34 = vld [vmem:[%s0 + $0x3c] sm:$0xf]
    %v35 = vld [vmem:[%s0 + $0x40] sm:$0xf]
    %v36 = vld [vmem:[%s0 + $0x44] sm:$0xf]
    %v37 = vld [vmem:[%s0 + $0x48] sm:$0xf]
    %v38 = vld [vmem:[%s0 + $0x4c] sm:$0xf]
    %v39 = vld [vmem:[%s0 + $0x50] sm:$0xf]
    %v40 = vld [vmem:[%s0 + $0x54] sm:$0xf]
    %v41 = vld [vmem:[%s0 + $0x58] sm:$0xf]
    %v42 = vld [vmem:[%s0 + $0x5c] sm:$0xf]
    %v43 = vld [vmem:[%s0 + $0x60] sm:$0xf]
    %v44 = vld [vmem:[%s0 + $0x64] sm:$0xf]
    %v45 = vld [vmem:[%s0 + $0x68] sm:$0xf]
    %v46 = vld [vmem:[%s0 + $0x6c] sm:$0xf]
    %v47 = vld [vmem:[%s0 + $0x70] sm:$0xf]
    %v48 = vld [vmem:[%s0 + $0x74] sm:$0xf]
    %v49 = vld [vmem:[%s0 + $0x78] sm:$0xf]
    %v50 = vld [vmem:[%s0 + $0x7c] sm:$0xf]
    %v51 = vld [vmem:[%s0 + $0x80] sm:$0xf]
    %v52 = vld [vmem:[%s0 + $0x84] sm:$0xf]
    %v53 = vld [vmem:[%s0 + $0x88] sm:$0xf]
    %v54 = vld [vmem:[%s0 + $0x8c] sm:$0xf]
    %v55 = vld [vmem:[%s0 + $0x90] sm:$0xf]
    %v56 = vld [vmem:[%s0 + $0x94] sm:$0xf]
    %v57 = vld [vmem:[%s0 + $0x98] sm:$0xf]
    %v58 = vld [vmem:[%s0 + $0x9c] sm:$0xf]
    %v59 = vld [vmem:[%s0 + $0xa0] sm:$0xf]
    %v60 = vld [vmem:[%s0 + $0xa4] sm:$0xf]
    %v61 = vld [vmem:[%s0 + $0xa8] sm:$0xf]
    %v62 = vld [vmem:[%s0 + $0xac] sm:$0xf]
    %v63 = vld [vmem:[%s0 + $0xb0] sm:$0xf]
    %v64 = vld [vmem:[%s0 + $0xb4] sm:$0xf]
    %v65 = vld [vmem:[%s0 + $0xb8] sm:$0xf]
    %v66 = vld [vmem:[%s0 + $0xbc] sm:$0xf]
    %v67 = vld [vmem:[%s0 + $0xc0] sm:$0xf]
    %v68 = vld [vmem:[%s0 + $0xc4] sm:$0xf]
    %v69 = vld [vmem:[%s0 + $0xc8] sm:$0xf]
    %v70 = vld [vmem:[%s0 + $0xcc] sm:$0xf]
    %v71 = vld [vmem:[%s0 + $0xd0] sm:$0xf]
    %v72 = vld [vmem:[%s0 + $0xd4] sm:$0xf]
    %v73 = vld [vmem:[%s0 + $0xd8] sm:$0xf]
    %v74 = vld [vmem:[%s0 + $0xdc] sm:$0xf]
    %v75 = vld [vmem:[%s0 + $0xe0] sm:$0xf]
    %v76 = vld [vmem:[%s0 + $0xe4] sm:$0xf]
    %v77 = vld [vmem:[%s0 + $0xe8] sm:$0xf]
    %v78 = vld [vmem:[%s0 + $0xec] sm:$0xf]
    %v79 = vld [vmem:[%s0 + $0xf0] sm:$0xf]
    %v80 = vld [vmem:[%s0 + $0xf4] sm:$0xf]
    %v81 = vld [vmem:[%s0 + $0xf8] sm:$0xf]
    %v82 = vld [vmem:[%s0 + $0xfc] sm:$0xf]
    %v83 = vld [vmem:[%s1] sm:$0xf]
    %v84 = vld [vmem:[%s1 + $0x4] sm:$0xf]
    %v85 = vld [vmem:[%s1 + $0x8] sm:$0xf]
    %v86 = vld [vmem:[%s1 + $0xc] sm:$0xf]
    %v87 = vld [vmem:[%s1 + $0x10] sm:$0x3]
    %v152 = vunpack.c.l.b16 %v19
    %v153 = vunpack.c.l.b16 %v20
    %v154 = vunpack.c.l.b16 %v21
    %v155 = vunpack.c.l.b16 %v22
    %v156 = vunpack.c.l.b16 %v23
    %v157 = vunpack.c.l.b16 %v24
    %v158 = vunpack.c.l.b16 %v25
    %v159 = vunpack.c.l.b16 %v26
    %v160 = vunpack.c.l.b16 %v27
    %v161 = vunpack.c.l.b16 %v28
    %v162 = vunpack.c.l.b16 %v29
    %v163 = vunpack.c.l.b16 %v30
    %v164 = vunpack.c.l.b16 %v31
    %v165 = vunpack.c.l.b16 %v32
    %v166 = vunpack.c.l.b16 %v33
    %v167 = vunpack.c.l.b16 %v34
    %v168 = vunpack.c.l.b16 %v35
    %v169 = vunpack.c.l.b16 %v36
    %v170 = vunpack.c.l.b16 %v37
    %v171 = vunpack.c.l.b16 %v38
    %v172 = vunpack.c.l.b16 %v39
    %v173 = vunpack.c.l.b16 %v40
    %v174 = vunpack.c.l.b16 %v41
    %v175 = vunpack.c.l.b16 %v42
    %v176 = vunpack.c.l.b16 %v43
    %v177 = vunpack.c.l.b16 %v44
    %v178 = vunpack.c.l.b16 %v45
    %v179 = vunpack.c.l.b16 %v46
    %v180 = vunpack.c.l.b16 %v47
    %v181 = vunpack.c.l.b16 %v48
    %v182 = vunpack.c.l.b16 %v49
    %v183 = vunpack.c.l.b16 %v50
    %v184 = vunpack.c.l.b16 %v51
    %v185 = vunpack.c.l.b16 %v52
    %v186 = vunpack.c.l.b16 %v53
    %v187 = vunpack.c.l.b16 %v54
    %v188 = vunpack.c.l.b16 %v55
    %v189 = vunpack.c.l.b16 %v56
    %v190 = vunpack.c.l.b16 %v57
    %v191 = vunpack.c.l.b16 %v58
    %v192 = vunpack.c.l.b16 %v59
    %v193 = vunpack.c.l.b16 %v60
    %v194 = vunpack.c.l.b16 %v61
    %v195 = vunpack.c.l.b16 %v62
    %v196 = vunpack.c.l.b16 %v63
    %v197 = vunpack.c.l.b16 %v64
    %v198 = vunpack.c.l.b16 %v65
    %v199 = vunpack.c.l.b16 %v66
    %v200 = vunpack.c.l.b16 %v67
    %v201 = vunpack.c.l.b16 %v68
    %v202 = vunpack.c.l.b16 %v69
    %v203 = vunpack.c.l.b16 %v70
    %v204 = vunpack.c.l.b16 %v71
    %v205 = vunpack.c.l.b16 %v72
    %v206 = vunpack.c.l.b16 %v73
    %v207 = vunpack.c.l.b16 %v74
    %v208 = vunpack.c.l.b16 %v75
    %v209 = vunpack.c.l.b16 %v76
    %v210 = vunpack.c.l.b16 %v77
    %v211 = vunpack.c.l.b16 %v78
    %v212 = vunpack.c.l.b16 %v79
    %v213 = vunpack.c.l.b16 %v80
    %v214 = vunpack.c.l.b16 %v81
    %v215 = vunpack.c.l.b16 %v82
    %v216 = vpack.c.b16 %v153, %v152
    %v217 = vpack.c.b16 %v155, %v154
    %v218 = vpack.c.b16 %v157, %v156
    %v219 = vpack.c.b16 %v159, %v158
    %v220 = vpack.c.b16 %v161, %v160
    %v221 = vpack.c.b16 %v163, %v162
    %v222 = vpack.c.b16 %v165, %v164
    %v223 = vpack.c.b16 %v167, %v166
    %v224 = vpack.c.b16 %v169, %v168
    %v225 = vpack.c.b16 %v171, %v170
    %v226 = vpack.c.b16 %v173, %v172
    %v227 = vpack.c.b16 %v175, %v174
    %v228 = vpack.c.b16 %v177, %v176
    %v229 = vpack.c.b16 %v179, %v178
    %v230 = vpack.c.b16 %v181, %v180
    %v231 = vpack.c.b16 %v183, %v182
    %v232 = vpack.c.b16 %v185, %v184
    %v233 = vpack.c.b16 %v187, %v186
    %v234 = vpack.c.b16 %v189, %v188
    %v235 = vpack.c.b16 %v191, %v190
    %v236 = vpack.c.b16 %v193, %v192
    %v237 = vpack.c.b16 %v195, %v194
    %v238 = vpack.c.b16 %v197, %v196
    %v239 = vpack.c.b16 %v199, %v198
    %v240 = vpack.c.b16 %v201, %v200
    %v241 = vpack.c.b16 %v203, %v202
    %v242 = vpack.c.b16 %v205, %v204
    %v243 = vpack.c.b16 %v207, %v206
    %v244 = vpack.c.b16 %v209, %v208
    %v245 = vpack.c.b16 %v211, %v210
    %v246 = vpack.c.b16 %v213, %v212
    %v247 = vpack.c.b16 %v215, %v214
    %v253 = vunpack.c.l.b16 %v83
    %v254 = vunpack.c.l.b16 %v84
    %v255 = vunpack.c.l.b16 %v85
    %v256 = vunpack.c.l.b16 %v86
    %v257 = vunpack.c.l.b16 %v87
    %v258 = vpack.c.b16 %v254, %v253
    %v259 = vpack.c.b16 %v256, %v255
    %v260 = vpack.c.b16 %v257, %v257
    %vm263 = vcmask 293888
    %v265 = vsel %vm263, %v216, 0
    %v268 = vsel %vm263, %v217, 0
    %v271 = vsel %vm263, %v218, 0
    %v274 = vsel %vm263, %v219, 0
    %v277 = vsel %vm263, %v220, 0
    %v280 = vsel %vm263, %v221, 0
    %v283 = vsel %vm263, %v222, 0
    %v286 = vsel %vm263, %v223, 0
    %v289 = vsel %vm263, %v224, 0
    %v292 = vsel %vm263, %v225, 0
    %v295 = vsel %vm263, %v226, 0
    %v298 = vsel %vm263, %v227, 0
    %v301 = vsel %vm263, %v228, 0
    %v304 = vsel %vm263, %v229, 0
    %v307 = vsel %vm263, %v230, 0
    %v310 = vsel %vm263, %v231, 0
    %v313 = vsel %vm263, %v232, 0
    %v316 = vsel %vm263, %v233, 0
    %v319 = vsel %vm263, %v234, 0
    %v322 = vsel %vm263, %v235, 0
    %v325 = vsel %vm263, %v236, 0
    %v328 = vsel %vm263, %v237, 0
    %v331 = vsel %vm263, %v238, 0
    %v334 = vsel %vm263, %v239, 0
    %v337 = vsel %vm263, %v240, 0
    %v340 = vsel %vm263, %v241, 0
    %v343 = vsel %vm263, %v242, 0
    %v346 = vsel %vm263, %v243, 0
    %v349 = vsel %vm263, %v244, 0
    %v352 = vsel %vm263, %v245, 0
    %v355 = vsel %vm263, %v246, 0
    %v358 = vsel %vm263, %v247, 0
    %vm360 = vcmask 1041408
    %v362 = vsel %vm360, %v260, 0
    %364 = vmatprep.subr.bf16.mxu0 0
    %365 = vmatpush1.bf16.msra.mxu0 %v258
    %366 = vmatprep.subr.bf16.mxu0 0
    %367 = vmatpush1.bf16.msra.mxu0 %v259
    %368 = vmatprep.subr.bf16.mxu0 0
    %369 = vmatpush1.bf16.msra.mxu0 %v362
    %370 = vmatprep.subr.bf16.mxu0 0
    %371 = vmatpush1.bf16.msra.mxu0 0
    %372 = vmatprep.subr.bf16.mxu0 0
    %373 = vmatpush1.bf16.msra.mxu0 0
    %374 = vmatprep.subr.bf16.mxu0 0
    %375 = vmatpush1.bf16.msra.mxu0 0
    %376 = vmatprep.subr.bf16.mxu0 0
    %377 = vmatpush1.bf16.msra.mxu0 0
    %378 = vmatprep.subr.bf16.mxu0 0
    %379 = vmatpush1.bf16.msra.mxu0 0
    %380 = vmatprep.subr.bf16.mxu0 0
    %381 = vmatpush1.bf16.msra.mxu0 0
    %382 = vmatprep.subr.bf16.mxu0 0
    %383 = vmatpush1.bf16.msra.mxu0 0
    %384 = vmatprep.subr.bf16.mxu0 0
    %385 = vmatpush1.bf16.msra.mxu0 0
    %386 = vmatprep.subr.bf16.mxu0 0
    %387 = vmatpush1.bf16.msra.mxu0 0
    %388 = vmatprep.subr.bf16.mxu0 0
    %389 = vmatpush1.bf16.msra.mxu0 0
    %390 = vmatprep.subr.bf16.mxu0 0
    %391 = vmatpush1.bf16.msra.mxu0 0
    %392 = vmatprep.subr.bf16.mxu0 0
    %393 = vmatpush1.bf16.msra.mxu0 0
    %394 = vmatprep.subr.bf16.mxu0 0
    %395 = vmatpush1.bf16.msra.mxu0 0
    %396 = vmatprep.mubr.bf16.mxu0 0
    %397 = vmatmul.mubr.bf16.gmra.mrb[0].mxu0 %v265
    %v398 = vpop.f32.mrb[0].mxu0
    %v399 = vadd.f32 0.0, %v398
    %v400 = vpop.f32.mrb[0].mxu0
    %v401 = vpop.f32.mrb[0].mxu0
    %v402 = vadd.f32 0.0, %v401
    %v403 = vpop.f32.mrb[0].mxu0
    %404 = vmatprep.mubr.bf16.mxu0 0
    %405 = vmatmul.mubr.bf16.gmra.mrb[0].mxu0 %v268
    %v406 = vpop.f32.mrb[0].mxu0
    %v407 = vadd.f32 0.0, %v406
    %v408 = vpop.f32.mrb[0].mxu0
    %v409 = vpop.f32.mrb[0].mxu0
    %v410 = vadd.f32 0.0, %v409
    %v411 = vpop.f32.mrb[0].mxu0
    %412 = vmatprep.mubr.bf16.mxu0 0
    %413 = vmatmul.mubr.bf16.gmra.mrb[0].mxu0 %v271
    %v414 = vpop.f32.mrb[0].mxu0
    %v415 = vadd.f32 0.0, %v414
    %v416 = vpop.f32.mrb[0].mxu0
    %v417 = vpop.f32.mrb[0].mxu0
    %v418 = vadd.f32 0.0, %v417
    %v419 = vpop.f32.mrb[0].mxu0
    %420 = vmatprep.mubr.bf16.mxu0 0
    %421 = vmatmul.mubr.bf16.gmra.mrb[0].mxu0 %v274
    %v422 = vpop.f32.mrb[0].mxu0
    %v423 = vadd.f32 0.0, %v422
    %v424 = vpop.f32.mrb[0].mxu0
    %v425 = vpop.f32.mrb[0].mxu0
    %v426 = vadd.f32 0.0, %v425
    %v427 = vpop.f32.mrb[0].mxu0
    %428 = vmatprep.mubr.bf16.mxu0 0
    %429 = vmatmul.mubr.bf16.gmra.mrb[0].mxu0 %v277
    %v430 = vpop.f32.mrb[0].mxu0
    %v431 = vadd.f32 0.0, %v430
    %v432 = vpop.f32.mrb[0].mxu0
    %v433 = vpop.f32.mrb[0].mxu0
    %v434 = vadd.f32 0.0, %v433
    %v435 = vpop.f32.mrb[0].mxu0
    %436 = vmatprep.mubr.bf16.mxu0 0
    %437 = vmatmul.mubr.bf16.gmra.mrb[0].mxu0 %v280
    %v438 = vpop.f32.mrb[0].mxu0
    %v439 = vadd.f32 0.0, %v438
    %v440 = vpop.f32.mrb[0].mxu0
    %v441 = vpop.f32.mrb[0].mxu0
    %v442 = vadd.f32 0.0, %v441
    %v443 = vpop.f32.mrb[0].mxu0
    %444 = vmatprep.mubr.bf16.mxu0 0
    %445 = vmatmul.mubr.bf16.gmra.mrb[0].mxu0 %v283
    %v446 = vpop.f32.mrb[0].mxu0
    %v447 = vadd.f32 0.0, %v446
    %v448 = vpop.f32.mrb[0].mxu0
    %v449 = vpop.f32.mrb[0].mxu0
    %v450 = vadd.f32 0.0, %v449
    %v451 = vpop.f32.mrb[0].mxu0
    %452 = vmatprep.mubr.bf16.mxu0 0
    %453 = vmatmul.mubr.bf16.gmra.mrb[0].mxu0 %v286
    %v454 = vpop.f32.mrb[0].mxu0
    %v455 = vadd.f32 0.0, %v454
    %v456 = vpop.f32.mrb[0].mxu0
    %v457 = vpop.f32.mrb[0].mxu0
    %v458 = vadd.f32 0.0, %v457
    %v459 = vpop.f32.mrb[0].mxu0
    %460 = vmatprep.mubr.bf16.mxu0 0
    %461 = vmatmul.mubr.bf16.gmra.mrb[0].mxu0 %v289
    %v462 = vpop.f32.mrb[0].mxu0
    %v463 = vadd.f32 0.0, %v462
    %v464 = vpop.f32.mrb[0].mxu0
    %v465 = vpop.f32.mrb[0].mxu0
    %v466 = vadd.f32 0.0, %v465
    %v467 = vpop.f32.mrb[0].mxu0
    %468 = vmatprep.mubr.bf16.mxu0 0
    %469 = vmatmul.mubr.bf16.gmra.mrb[0].mxu0 %v292
    %v470 = vpop.f32.mrb[0].mxu0
    %v471 = vadd.f32 0.0, %v470
    %v472 = vpop.f32.mrb[0].mxu0
    %v473 = vpop.f32.mrb[0].mxu0
    %v474 = vadd.f32 0.0, %v473
    %v475 = vpop.f32.mrb[0].mxu0
    %476 = vmatprep.mubr.bf16.mxu0 0
    %477 = vmatmul.mubr.bf16.gmra.mrb[0].mxu0 %v295
    %v478 = vpop.f32.mrb[0].mxu0
    %v479 = vadd.f32 0.0, %v478
    %v480 = vpop.f32.mrb[0].mxu0
    %v481 = vpop.f32.mrb[0].mxu0
    %v482 = vadd.f32 0.0, %v481
    %v483 = vpop.f32.mrb[0].mxu0
    %484 = vmatprep.mubr.bf16.mxu0 0
    %485 = vmatmul.mubr.bf16.gmra.mrb[0].mxu0 %v298
    %v486 = vpop.f32.mrb[0].mxu0
    %v487 = vadd.f32 0.0, %v486
    %v488 = vpop.f32.mrb[0].mxu0
    %v489 = vpop.f32.mrb[0].mxu0
    %v490 = vadd.f32 0.0, %v489
    %v491 = vpop.f32.mrb[0].mxu0
    %492 = vmatprep.mubr.bf16.mxu0 0
    %493 = vmatmul.mubr.bf16.gmra.mrb[0].mxu0 %v301
    %v494 = vpop.f32.mrb[0].mxu0
    %v495 = vadd.f32 0.0, %v494
    %v496 = vpop.f32.mrb[0].mxu0
    %v497 = vpop.f32.mrb[0].mxu0
    %v498 = vadd.f32 0.0, %v497
    %v499 = vpop.f32.mrb[0].mxu0
    %500 = vmatprep.mubr.bf16.mxu0 0
    %501 = vmatmul.mubr.bf16.gmra.mrb[0].mxu0 %v304
    %v502 = vpop.f32.mrb[0].mxu0
    %v503 = vadd.f32 0.0, %v502
    %v504 = vpop.f32.mrb[0].mxu0
    %v505 = vpop.f32.mrb[0].mxu0
    %v506 = vadd.f32 0.0, %v505
    %v507 = vpop.f32.mrb[0].mxu0
    %508 = vmatprep.mubr.bf16.mxu0 0
    %509 = vmatmul.mubr.bf16.gmra.mrb[0].mxu0 %v307
    %v510 = vpop.f32.mrb[0].mxu0
    %v511 = vadd.f32 0.0, %v510
    %v512 = vpop.f32.mrb[0].mxu0
    %v513 = vpop.f32.mrb[0].mxu0
    %v514 = vadd.f32 0.0, %v513
    %v515 = vpop.f32.mrb[0].mxu0
    %516 = vmatprep.mubr.bf16.mxu0 0
    %517 = vmatmul.mubr.bf16.gmra.mrb[0].mxu0 %v310
    %v518 = vpop.f32.mrb[0].mxu0
    %v519 = vadd.f32 0.0, %v518
    %v520 = vpop.f32.mrb[0].mxu0
    %v521 = vpop.f32.mrb[0].mxu0
    %v522 = vadd.f32 0.0, %v521
    %v523 = vpop.f32.mrb[0].mxu0
    %524 = vmatprep.mubr.bf16.mxu0 0
    %525 = vmatmul.mubr.bf16.gmra.mrb[0].mxu0 %v313
    %v526 = vpop.f32.mrb[0].mxu0
    %v527 = vadd.f32 0.0, %v526
    %v528 = vpop.f32.mrb[0].mxu0
    %v529 = vpop.f32.mrb[0].mxu0
    %v530 = vadd.f32 0.0, %v529
    %v531 = vpop.f32.mrb[0].mxu0
    %532 = vmatprep.mubr.bf16.mxu0 0
    %533 = vmatmul.mubr.bf16.gmra.mrb[0].mxu0 %v316
    %v534 = vpop.f32.mrb[0].mxu0
    %v535 = vadd.f32 0.0, %v534
    %v536 = vpop.f32.mrb[0].mxu0
    %v537 = vpop.f32.mrb[0].mxu0
    %v538 = vadd.f32 0.0, %v537
    %v539 = vpop.f32.mrb[0].mxu0
    %540 = vmatprep.mubr.bf16.mxu0 0
    %541 = vmatmul.mubr.bf16.gmra.mrb[0].mxu0 %v319
    %v542 = vpop.f32.mrb[0].mxu0
    %v543 = vadd.f32 0.0, %v542
    %v544 = vpop.f32.mrb[0].mxu0
    %v545 = vpop.f32.mrb[0].mxu0
    %v546 = vadd.f32 0.0, %v545
    %v547 = vpop.f32.mrb[0].mxu0
    %548 = vmatprep.mubr.bf16.mxu0 0
    %549 = vmatmul.mubr.bf16.gmra.mrb[0].mxu0 %v322
    %v550 = vpop.f32.mrb[0].mxu0
    %v551 = vadd.f32 0.0, %v550
    %v552 = vpop.f32.mrb[0].mxu0
    %v553 = vpop.f32.mrb[0].mxu0
    %v554 = vadd.f32 0.0, %v553
    %v555 = vpop.f32.mrb[0].mxu0
    %556 = vmatprep.mubr.bf16.mxu0 0
    %557 = vmatmul.mubr.bf16.gmra.mrb[0].mxu0 %v325
    %v558 = vpop.f32.mrb[0].mxu0
    %v559 = vadd.f32 0.0, %v558
    %v560 = vpop.f32.mrb[0].mxu0
    %v561 = vpop.f32.mrb[0].mxu0
    %v562 = vadd.f32 0.0, %v561
    %v563 = vpop.f32.mrb[0].mxu0
    %564 = vmatprep.mubr.bf16.mxu0 0
    %565 = vmatmul.mubr.bf16.gmra.mrb[0].mxu0 %v328
    %v566 = vpop.f32.mrb[0].mxu0
    %v567 = vadd.f32 0.0, %v566
    %v568 = vpop.f32.mrb[0].mxu0
    %v569 = vpop.f32.mrb[0].mxu0
    %v570 = vadd.f32 0.0, %v569
    %v571 = vpop.f32.mrb[0].mxu0
    %572 = vmatprep.mubr.bf16.mxu0 0
    %573 = vmatmul.mubr.bf16.gmra.mrb[0].mxu0 %v331
    %v574 = vpop.f32.mrb[0].mxu0
    %v575 = vadd.f32 0.0, %v574
    %v576 = vpop.f32.mrb[0].mxu0
    %v577 = vpop.f32.mrb[0].mxu0
    %v578 = vadd.f32 0.0, %v577
    %v579 = vpop.f32.mrb[0].mxu0
    %580 = vmatprep.mubr.bf16.mxu0 0
    %581 = vmatmul.mubr.bf16.gmra.mrb[0].mxu0 %v334
    %v582 = vpop.f32.mrb[0].mxu0
    %v583 = vadd.f32 0.0, %v582
    %v584 = vpop.f32.mrb[0].mxu0
    %v585 = vpop.f32.mrb[0].mxu0
    %v586 = vadd.f32 0.0, %v585
    %v587 = vpop.f32.mrb[0].mxu0
    %588 = vmatprep.mubr.bf16.mxu0 0
    %589 = vmatmul.mubr.bf16.gmra.mrb[0].mxu0 %v337
    %v590 = vpop.f32.mrb[0].mxu0
    %v591 = vadd.f32 0.0, %v590
    %v592 = vpop.f32.mrb[0].mxu0
    %v593 = vpop.f32.mrb[0].mxu0
    %v594 = vadd.f32 0.0, %v593
    %v595 = vpop.f32.mrb[0].mxu0
    %596 = vmatprep.mubr.bf16.mxu0 0
    %597 = vmatmul.mubr.bf16.gmra.mrb[0].mxu0 %v340
    %v598 = vpop.f32.mrb[0].mxu0
    %v599 = vadd.f32 0.0, %v598
    %v600 = vpop.f32.mrb[0].mxu0
    %v601 = vpop.f32.mrb[0].mxu0
    %v602 = vadd.f32 0.0, %v601
    %v603 = vpop.f32.mrb[0].mxu0
    %604 = vmatprep.mubr.bf16.mxu0 0
    %605 = vmatmul.mubr.bf16.gmra.mrb[0].mxu0 %v343
    %v606 = vpop.f32.mrb[0].mxu0
    %v607 = vadd.f32 0.0, %v606
    %v608 = vpop.f32.mrb[0].mxu0
    %v609 = vpop.f32.mrb[0].mxu0
    %v610 = vadd.f32 0.0, %v609
    %v611 = vpop.f32.mrb[0].mxu0
    %612 = vmatprep.mubr.bf16.mxu0 0
    %613 = vmatmul.mubr.bf16.gmra.mrb[0].mxu0 %v346
    %v614 = vpop.f32.mrb[0].mxu0
    %v615 = vadd.f32 0.0, %v614
    %v616 = vpop.f32.mrb[0].mxu0
    %v617 = vpop.f32.mrb[0].mxu0
    %v618 = vadd.f32 0.0, %v617
    %v619 = vpop.f32.mrb[0].mxu0
    %620 = vmatprep.mubr.bf16.mxu0 0
    %621 = vmatmul.mubr.bf16.gmra.mrb[0].mxu0 %v349
    %v622 = vpop.f32.mrb[0].mxu0
    %v623 = vadd.f32 0.0, %v622
    %v624 = vpop.f32.mrb[0].mxu0
    %v625 = vpop.f32.mrb[0].mxu0
    %v626 = vadd.f32 0.0, %v625
    %v627 = vpop.f32.mrb[0].mxu0
    %628 = vmatprep.mubr.bf16.mxu0 0
    %629 = vmatmul.mubr.bf16.gmra.mrb[0].mxu0 %v352
    %v630 = vpop.f32.mrb[0].mxu0
    %v631 = vadd.f32 0.0, %v630
    %v632 = vpop.f32.mrb[0].mxu0
    %v633 = vpop.f32.mrb[0].mxu0
    %v634 = vadd.f32 0.0, %v633
    %v635 = vpop.f32.mrb[0].mxu0
    %636 = vmatprep.mubr.bf16.mxu0 0
    %637 = vmatmul.mubr.bf16.gmra.mrb[0].mxu0 %v355
    %v638 = vpop.f32.mrb[0].mxu0
    %v639 = vadd.f32 0.0, %v638
    %v640 = vpop.f32.mrb[0].mxu0
    %v641 = vpop.f32.mrb[0].mxu0
    %v642 = vadd.f32 0.0, %v641
    %v643 = vpop.f32.mrb[0].mxu0
    %644 = vmatprep.mubr.bf16.mxu0 0
    %645 = vmatmul.mubr.bf16.gmra.mrb[0].mxu0 %v358
    %v646 = vpop.f32.mrb[0].mxu0
    %v647 = vadd.f32 0.0, %v646
    %v648 = vpop.f32.mrb[0].mxu0
    %v649 = vpop.f32.mrb[0].mxu0
    %v650 = vadd.f32 0.0, %v649
    %v651 = vpop.f32.mrb[0].mxu0
    %652 = vdwg.mxu0
    %v653 = vld [vmem:[%s2] sm:$0x1]
    %v655 = vlaneseq
    %v656 = vshrl.u32 %v655, 7
    %v657 = vsub.s32 0, %v656
    %v658 = vrot.slane %v653, %v657
    %v660 = vmul.f32 %v399, %v658
    %v661 = vmul.f32 %v402, %v658
    %v662 = vmul.f32 %v407, %v658
    %v663 = vmul.f32 %v410, %v658
    %v664 = vmul.f32 %v415, %v658
    %v665 = vmul.f32 %v418, %v658
    %v666 = vmul.f32 %v423, %v658
    %v667 = vmul.f32 %v426, %v658
    %v668 = vmul.f32 %v431, %v658
    %v669 = vmul.f32 %v434, %v658
    %v670 = vmul.f32 %v439, %v658
    %v671 = vmul.f32 %v442, %v658
    %v672 = vmul.f32 %v447, %v658
    %v673 = vmul.f32 %v450, %v658
    %v674 = vmul.f32 %v455, %v658
    %v675 = vmul.f32 %v458, %v658
    %v676 = vmul.f32 %v463, %v658
    %v677 = vmul.f32 %v466, %v658
    %v678 = vmul.f32 %v471, %v658
    %v679 = vmul.f32 %v474, %v658
    %v680 = vmul.f32 %v479, %v658
    %v681 = vmul.f32 %v482, %v658
    %v682 = vmul.f32 %v487, %v658
    %v683 = vmul.f32 %v490, %v658
    %v684 = vmul.f32 %v495, %v658
    %v685 = vmul.f32 %v498, %v658
    %v686 = vmul.f32 %v503, %v658
    %v687 = vmul.f32 %v506, %v658
    %v688 = vmul.f32 %v511, %v658
    %v689 = vmul.f32 %v514, %v658
    %v690 = vmul.f32 %v519, %v658
    %v691 = vmul.f32 %v522, %v658
    %v692 = vmul.f32 %v527, %v658
    %v693 = vmul.f32 %v530, %v658
    %v694 = vmul.f32 %v535, %v658
    %v695 = vmul.f32 %v538, %v658
    %v696 = vmul.f32 %v543, %v658
    %v697 = vmul.f32 %v546, %v658
    %v698 = vmul.f32 %v551, %v658
    %v699 = vmul.f32 %v554, %v658
    %v700 = vmul.f32 %v559, %v658
    %v701 = vmul.f32 %v562, %v658
    %v702 = vmul.f32 %v567, %v658
    %v703 = vmul.f32 %v570, %v658
    %v704 = vmul.f32 %v575, %v658
    %v705 = vmul.f32 %v578, %v658
    %v706 = vmul.f32 %v583, %v658
    %v707 = vmul.f32 %v586, %v658
    %v708 = vmul.f32 %v591, %v658
    %v709 = vmul.f32 %v594, %v658
    %v710 = vmul.f32 %v599, %v658
    %v711 = vmul.f32 %v602, %v658
    %v712 = vmul.f32 %v607, %v658
    %v713 = vmul.f32 %v610, %v658
    %v714 = vmul.f32 %v615, %v658
    %v715 = vmul.f32 %v618, %v658
    %v716 = vmul.f32 %v623, %v658
    %v717 = vmul.f32 %v626, %v658
    %v718 = vmul.f32 %v631, %v658
    %v719 = vmul.f32 %v634, %v658
    %v720 = vmul.f32 %v639, %v658
    %v721 = vmul.f32 %v642, %v658
    %v722 = vmul.f32 %v647, %v658
    %v723 = vmul.f32 %v650, %v658
    %v724 = vld [vmem:[%s3] sm:$0x1]
    %v726 = vlaneseq
    %v727 = vshrl.u32 %v726, 7
    %v728 = vsub.s32 0, %v727
    %v729 = vrot.slane %v724, %v728
    %v731 = vadd.f32 %v660, %v729
    %v732 = vadd.f32 %v661, %v729
    %v733 = vadd.f32 %v662, %v729
    %v734 = vadd.f32 %v663, %v729
    %v735 = vadd.f32 %v664, %v729
    %v736 = vadd.f32 %v665, %v729
    %v737 = vadd.f32 %v666, %v729
    %v738 = vadd.f32 %v667, %v729
    %v739 = vadd.f32 %v668, %v729
    %v740 = vadd.f32 %v669, %v729
    %v741 = vadd.f32 %v670, %v729
    %v742 = vadd.f32 %v671, %v729
    %v743 = vadd.f32 %v672, %v729
    %v744 = vadd.f32 %v673, %v729
    %v745 = vadd.f32 %v674, %v729
    %v746 = vadd.f32 %v675, %v729
    %v747 = vadd.f32 %v676, %v729
    %v748 = vadd.f32 %v677, %v729
    %v749 = vadd.f32 %v678, %v729
    %v750 = vadd.f32 %v679, %v729
    %v751 = vadd.f32 %v680, %v729
    %v752 = vadd.f32 %v681, %v729
    %v753 = vadd.f32 %v682, %v729
    %v754 = vadd.f32 %v683, %v729
    %v755 = vadd.f32 %v684, %v729
    %v756 = vadd.f32 %v685, %v729
    %v757 = vadd.f32 %v686, %v729
    %v758 = vadd.f32 %v687, %v729
    %v759 = vadd.f32 %v688, %v729
    %v760 = vadd.f32 %v689, %v729
    %v761 = vadd.f32 %v690, %v729
    %v762 = vadd.f32 %v691, %v729
    %v763 = vadd.f32 %v692, %v729
    %v764 = vadd.f32 %v693, %v729
    %v765 = vadd.f32 %v694, %v729
    %v766 = vadd.f32 %v695, %v729
    %v767 = vadd.f32 %v696, %v729
    %v768 = vadd.f32 %v697, %v729
    %v769 = vadd.f32 %v698, %v729
    %v770 = vadd.f32 %v699, %v729
    %v771 = vadd.f32 %v700, %v729
    %v772 = vadd.f32 %v701, %v729
    %v773 = vadd.f32 %v702, %v729
    %v774 = vadd.f32 %v703, %v729
    %v775 = vadd.f32 %v704, %v729
    %v776 = vadd.f32 %v705, %v729
    %v777 = vadd.f32 %v706, %v729
    %v778 = vadd.f32 %v707, %v729
    %v779 = vadd.f32 %v708, %v729
    %v780 = vadd.f32 %v709, %v729
    %v781 = vadd.f32 %v710, %v729
    %v782 = vadd.f32 %v711, %v729
    %v783 = vadd.f32 %v712, %v729
    %v784 = vadd.f32 %v713, %v729
    %v785 = vadd.f32 %v714, %v729
    %v786 = vadd.f32 %v715, %v729
    %v787 = vadd.f32 %v716, %v729
    %v788 = vadd.f32 %v717, %v729
    %v789 = vadd.f32 %v718, %v729
    %v790 = vadd.f32 %v719, %v729
    %v791 = vadd.f32 %v720, %v729
    %v792 = vadd.f32 %v721, %v729
    %v793 = vadd.f32 %v722, %v729
    %v794 = vadd.f32 %v723, %v729
    %v795 = vmax.f32 %v731, 0.0
    %v796 = vmax.f32 %v732, 0.0
    %v797 = vmax.f32 %v733, 0.0
    %v798 = vmax.f32 %v734, 0.0
    %v799 = vmax.f32 %v735, 0.0
    %v800 = vmax.f32 %v736, 0.0
    %v801 = vmax.f32 %v737, 0.0
    %v802 = vmax.f32 %v738, 0.0
    %v803 = vmax.f32 %v739, 0.0
    %v804 = vmax.f32 %v740, 0.0
    %v805 = vmax.f32 %v741, 0.0
    %v806 = vmax.f32 %v742, 0.0
    %v807 = vmax.f32 %v743, 0.0
    %v808 = vmax.f32 %v744, 0.0
    %v809 = vmax.f32 %v745, 0.0
    %v810 = vmax.f32 %v746, 0.0
    %v811 = vmax.f32 %v747, 0.0
    %v812 = vmax.f32 %v748, 0.0
    %v813 = vmax.f32 %v749, 0.0
    %v814 = vmax.f32 %v750, 0.0
    %v815 = vmax.f32 %v751, 0.0
    %v816 = vmax.f32 %v752, 0.0
    %v817 = vmax.f32 %v753, 0.0
    %v818 = vmax.f32 %v754, 0.0
    %v819 = vmax.f32 %v755, 0.0
    %v820 = vmax.f32 %v756, 0.0
    %v821 = vmax.f32 %v757, 0.0
    %v822 = vmax.f32 %v758, 0.0
    %v823 = vmax.f32 %v759, 0.0
    %v824 = vmax.f32 %v760, 0.0
    %v825 = vmax.f32 %v761, 0.0
    %v826 = vmax.f32 %v762, 0.0
    %v827 = vmax.f32 %v763, 0.0
    %v828 = vmax.f32 %v764, 0.0
    %v829 = vmax.f32 %v765, 0.0
    %v830 = vmax.f32 %v766, 0.0
    %v831 = vmax.f32 %v767, 0.0
    %v832 = vmax.f32 %v768, 0.0
    %v833 = vmax.f32 %v769, 0.0
    %v834 = vmax.f32 %v770, 0.0
    %v835 = vmax.f32 %v771, 0.0
    %v836 = vmax.f32 %v772, 0.0
    %v837 = vmax.f32 %v773, 0.0
    %v838 = vmax.f32 %v774, 0.0
    %v839 = vmax.f32 %v775, 0.0
    %v840 = vmax.f32 %v776, 0.0
    %v841 = vmax.f32 %v777, 0.0
    %v842 = vmax.f32 %v778, 0.0
    %v843 = vmax.f32 %v779, 0.0
    %v844 = vmax.f32 %v780, 0.0
    %v845 = vmax.f32 %v781, 0.0
    %v846 = vmax.f32 %v782, 0.0
    %v847 = vmax.f32 %v783, 0.0
    %v848 = vmax.f32 %v784, 0.0
    %v849 = vmax.f32 %v785, 0.0
    %v850 = vmax.f32 %v786, 0.0
    %v851 = vmax.f32 %v787, 0.0
    %v852 = vmax.f32 %v788, 0.0
    %v853 = vmax.f32 %v789, 0.0
    %v854 = vmax.f32 %v790, 0.0
    %v855 = vmax.f32 %v791, 0.0
    %v856 = vmax.f32 %v792, 0.0
    %v857 = vmax.f32 %v793, 0.0
    %v858 = vmax.f32 %v794, 0.0
    %v859 = vpack.c.bf16 %v796, %v795
    %v860 = vpack.c.bf16 %v798, %v797
    %v861 = vpack.c.bf16 %v800, %v799
    %v862 = vpack.c.bf16 %v802, %v801
    %v863 = vpack.c.bf16 %v804, %v803
    %v864 = vpack.c.bf16 %v806, %v805
    %v865 = vpack.c.bf16 %v808, %v807
    %v866 = vpack.c.bf16 %v810, %v809
    %v867 = vpack.c.bf16 %v812, %v811
    %v868 = vpack.c.bf16 %v814, %v813
    %v869 = vpack.c.bf16 %v816, %v815
    %v870 = vpack.c.bf16 %v818, %v817
    %v871 = vpack.c.bf16 %v820, %v819
    %v872 = vpack.c.bf16 %v822, %v821
    %v873 = vpack.c.bf16 %v824, %v823
    %v874 = vpack.c.bf16 %v826, %v825
    %v875 = vpack.c.bf16 %v828, %v827
    %v876 = vpack.c.bf16 %v830, %v829
    %v877 = vpack.c.bf16 %v832, %v831
    %v878 = vpack.c.bf16 %v834, %v833
    %v879 = vpack.c.bf16 %v836, %v835
    %v880 = vpack.c.bf16 %v838, %v837
    %v881 = vpack.c.bf16 %v840, %v839
    %v882 = vpack.c.bf16 %v842, %v841
    %v883 = vpack.c.bf16 %v844, %v843
    %v884 = vpack.c.bf16 %v846, %v845
    %v885 = vpack.c.bf16 %v848, %v847
    %v886 = vpack.c.bf16 %v850, %v849
    %v887 = vpack.c.bf16 %v852, %v851
    %v888 = vpack.c.bf16 %v854, %v853
    %v889 = vpack.c.bf16 %v856, %v855
    %v890 = vpack.c.bf16 %v858, %v857
    %v923 = vunpack.c.l.b16 %v859
    %v924 = vunpack.c.h.b16 %v859
    %v925 = vunpack.c.l.b16 %v860
    %v926 = vunpack.c.h.b16 %v860
    %v927 = vunpack.c.l.b16 %v861
    %v928 = vunpack.c.h.b16 %v861
    %v929 = vunpack.c.l.b16 %v862
    %v930 = vunpack.c.h.b16 %v862
    %v931 = vunpack.c.l.b16 %v863
    %v932 = vunpack.c.h.b16 %v863
    %v933 = vunpack.c.l.b16 %v864
    %v934 = vunpack.c.h.b16 %v864
    %v935 = vunpack.c.l.b16 %v865
    %v936 = vunpack.c.h.b16 %v865
    %v937 = vunpack.c.l.b16 %v866
    %v938 = vunpack.c.h.b16 %v866
    %v939 = vunpack.c.l.b16 %v867
    %v940 = vunpack.c.h.b16 %v867
    %v941 = vunpack.c.l.b16 %v868
    %v942 = vunpack.c.h.b16 %v868
    %v943 = vunpack.c.l.b16 %v869
    %v944 = vunpack.c.h.b16 %v869
    %v945 = vunpack.c.l.b16 %v870
    %v946 = vunpack.c.h.b16 %v870
    %v947 = vunpack.c.l.b16 %v871
    %v948 = vunpack.c.h.b16 %v871
    %v949 = vunpack.c.l.b16 %v872
    %v950 = vunpack.c.h.b16 %v872
    %v951 = vunpack.c.l.b16 %v873
    %v952 = vunpack.c.h.b16 %v873
    %v953 = vunpack.c.l.b16 %v874
    %v954 = vunpack.c.h.b16 %v874
    %v955 = vunpack.c.l.b16 %v875
    %v956 = vunpack.c.h.b16 %v875
    %v957 = vunpack.c.l.b16 %v876
    %v958 = vunpack.c.h.b16 %v876
    %v959 = vunpack.c.l.b16 %v877
    %v960 = vunpack.c.h.b16 %v877
    %v961 = vunpack.c.l.b16 %v878
    %v962 = vunpack.c.h.b16 %v878
    %v963 = vunpack.c.l.b16 %v879
    %v964 = vunpack.c.h.b16 %v879
    %v965 = vunpack.c.l.b16 %v880
    %v966 = vunpack.c.h.b16 %v880
    %v967 = vunpack.c.l.b16 %v881
    %v968 = vunpack.c.h.b16 %v881
    %v969 = vunpack.c.l.b16 %v882
    %v970 = vunpack.c.h.b16 %v882
    %v971 = vunpack.c.l.b16 %v883
    %v972 = vunpack.c.h.b16 %v883
    %v973 = vunpack.c.l.b16 %v884
    %v974 = vunpack.c.h.b16 %v884
    %v975 = vunpack.c.l.b16 %v885
    %v976 = vunpack.c.h.b16 %v885
    %v977 = vunpack.c.l.b16 %v886
    %v978 = vunpack.c.h.b16 %v886
    %v979 = vunpack.c.l.b16 %v887
    %v980 = vunpack.c.h.b16 %v887
    %v981 = vunpack.c.l.b16 %v888
    %v982 = vunpack.c.h.b16 %v888
    %v983 = vunpack.c.l.b16 %v889
    %v984 = vunpack.c.h.b16 %v889
    %v985 = vunpack.c.l.b16 %v890
    %v986 = vunpack.c.h.b16 %v890
    %v987 = vpack.c.b16 %v923, %v923
    %v988 = vpack.c.b16 %v924, %v924
    %v989 = vpack.c.b16 %v925, %v925
    %v990 = vpack.c.b16 %v926, %v926
    %v991 = vpack.c.b16 %v927, %v927
    %v992 = vpack.c.b16 %v928, %v928
    %v993 = vpack.c.b16 %v929, %v929
    %v994 = vpack.c.b16 %v930, %v930
    %v995 = vpack.c.b16 %v931, %v931
    %v996 = vpack.c.b16 %v932, %v932
    %v997 = vpack.c.b16 %v933, %v933
    %v998 = vpack.c.b16 %v934, %v934
    %v999 = vpack.c.b16 %v935, %v935
    %v1000 = vpack.c.b16 %v936, %v936
    %v1001 = vpack.c.b16 %v937, %v937
    %v1002 = vpack.c.b16 %v938, %v938
    %v1003 = vpack.c.b16 %v939, %v939
    %v1004 = vpack.c.b16 %v940, %v940
    %v1005 = vpack.c.b16 %v941, %v941
    %v1006 = vpack.c.b16 %v942, %v942
    %v1007 = vpack.c.b16 %v943, %v943
    %v1008 = vpack.c.b16 %v944, %v944
    %v1009 = vpack.c.b16 %v945, %v945
    %v1010 = vpack.c.b16 %v946, %v946
    %v1011 = vpack.c.b16 %v947, %v947
    %v1012 = vpack.c.b16 %v948, %v948
    %v1013 = vpack.c.b16 %v949, %v949
    %v1014 = vpack.c.b16 %v950, %v950
    %v1015 = vpack.c.b16 %v951, %v951
    %v1016 = vpack.c.b16 %v952, %v952
    %v1017 = vpack.c.b16 %v953, %v953
    %v1018 = vpack.c.b16 %v954, %v954
    %v1019 = vpack.c.b16 %v955, %v955
    %v1020 = vpack.c.b16 %v956, %v956
    %v1021 = vpack.c.b16 %v957, %v957
    %v1022 = vpack.c.b16 %v958, %v958
    %v1023 = vpack.c.b16 %v959, %v959
    %v1024 = vpack.c.b16 %v960, %v960
    %v1025 = vpack.c.b16 %v961, %v961
    %v1026 = vpack.c.b16 %v962, %v962
    %v1027 = vpack.c.b16 %v963, %v963
    %v1028 = vpack.c.b16 %v964, %v964
    %v1029 = vpack.c.b16 %v965, %v965
    %v1030 = vpack.c.b16 %v966, %v966
    %v1031 = vpack.c.b16 %v967, %v967
    %v1032 = vpack.c.b16 %v968, %v968
    %v1033 = vpack.c.b16 %v969, %v969
    %v1034 = vpack.c.b16 %v970, %v970
    %v1035 = vpack.c.b16 %v971, %v971
    %v1036 = vpack.c.b16 %v972, %v972
    %v1037 = vpack.c.b16 %v973, %v973
    %v1038 = vpack.c.b16 %v974, %v974
    %v1039 = vpack.c.b16 %v975, %v975
    %v1040 = vpack.c.b16 %v976, %v976
    %v1041 = vpack.c.b16 %v977, %v977
    %v1042 = vpack.c.b16 %v978, %v978
    %v1043 = vpack.c.b16 %v979, %v979
    %v1044 = vpack.c.b16 %v980, %v980
    %v1045 = vpack.c.b16 %v981, %v981
    %v1046 = vpack.c.b16 %v982, %v982
    %v1047 = vpack.c.b16 %v983, %v983
    %v1048 = vpack.c.b16 %v984, %v984
    %v1049 = vpack.c.b16 %v985, %v985
    %v1050 = vpack.c.b16 %v986, %v986
    %1115 = vst [vmem:[#allocation2] sm:$0xf] %v987
    %1116 = vst [vmem:[#allocation2 + $0x4] sm:$0xf] %v988
    %1117 = vst [vmem:[#allocation2 + $0x8] sm:$0xf] %v989
    %1118 = vst [vmem:[#allocation2 + $0xc] sm:$0xf] %v990
    %1119 = vst [vmem:[#allocation2 + $0x10] sm:$0xf] %v991
    %1120 = vst [vmem:[#allocation2 + $0x14] sm:$0xf] %v992
    %1121 = vst [vmem:[#allocation2 + $0x18] sm:$0xf] %v993
    %1122 = vst [vmem:[#allocation2 + $0x1c] sm:$0xf] %v994
    %1123 = vst [vmem:[#allocation2 + $0x20] sm:$0xf] %v995
    %1124 = vst [vmem:[#allocation2 + $0x24] sm:$0xf] %v996
    %1125 = vst [vmem:[#allocation2 + $0x28] sm:$0xf] %v997
    %1126 = vst [vmem:[#allocation2 + $0x2c] sm:$0xf] %v998
    %1127 = vst [vmem:[#allocation2 + $0x30] sm:$0xf] %v999
    %1128 = vst [vmem:[#allocation2 + $0x34] sm:$0xf] %v1000
    %1129 = vst [vmem:[#allocation2 + $0x38] sm:$0xf] %v1001
    %1130 = vst [vmem:[#allocation2 + $0x3c] sm:$0xf] %v1002
    %1131 = vst [vmem:[#allocation2 + $0x40] sm:$0xf] %v1003
    %1132 = vst [vmem:[#allocation2 + $0x44] sm:$0xf] %v1004
    %1133 = vst [vmem:[#allocation2 + $0x48] sm:$0xf] %v1005
    %1134 = vst [vmem:[#allocation2 + $0x4c] sm:$0xf] %v1006
    %1135 = vst [vmem:[#allocation2 + $0x50] sm:$0xf] %v1007
    %1136 = vst [vmem:[#allocation2 + $0x54] sm:$0xf] %v1008
    %1137 = vst [vmem:[#allocation2 + $0x58] sm:$0xf] %v1009
    %1138 = vst [vmem:[#allocation2 + $0x5c] sm:$0xf] %v1010
    %1139 = vst [vmem:[#allocation2 + $0x60] sm:$0xf] %v1011
    %1140 = vst [vmem:[#allocation2 + $0x64] sm:$0xf] %v1012
    %1141 = vst [vmem:[#allocation2 + $0x68] sm:$0xf] %v1013
    %1142 = vst [vmem:[#allocation2 + $0x6c] sm:$0xf] %v1014
    %1143 = vst [vmem:[#allocation2 + $0x70] sm:$0xf] %v1015
    %1144 = vst [vmem:[#allocation2 + $0x74] sm:$0xf] %v1016
    %1145 = vst [vmem:[#allocation2 + $0x78] sm:$0xf] %v1017
    %1146 = vst [vmem:[#allocation2 + $0x7c] sm:$0xf] %v1018
    %1147 = vst [vmem:[#allocation2 + $0x80] sm:$0xf] %v1019
    %1148 = vst [vmem:[#allocation2 + $0x84] sm:$0xf] %v1020
    %1149 = vst [vmem:[#allocation2 + $0x88] sm:$0xf] %v1021
    %1150 = vst [vmem:[#allocation2 + $0x8c] sm:$0xf] %v1022
    %1151 = vst [vmem:[#allocation2 + $0x90] sm:$0xf] %v1023
    %1152 = vst [vmem:[#allocation2 + $0x94] sm:$0xf] %v1024
    %1153 = vst [vmem:[#allocation2 + $0x98] sm:$0xf] %v1025
    %1154 = vst [vmem:[#allocation2 + $0x9c] sm:$0xf] %v1026
    %1155 = vst [vmem:[#allocation2 + $0xa0] sm:$0xf] %v1027
    %1156 = vst [vmem:[#allocation2 + $0xa4] sm:$0xf] %v1028
    %1157 = vst [vmem:[#allocation2 + $0xa8] sm:$0xf] %v1029
    %1158 = vst [vmem:[#allocation2 + $0xac] sm:$0xf] %v1030
    %1159 = vst [vmem:[#allocation2 + $0xb0] sm:$0xf] %v1031
    %1160 = vst [vmem:[#allocation2 + $0xb4] sm:$0xf] %v1032
    %1161 = vst [vmem:[#allocation2 + $0xb8] sm:$0xf] %v1033
    %1162 = vst [vmem:[#allocation2 + $0xbc] sm:$0xf] %v1034
    %1163 = vst [vmem:[#allocation2 + $0xc0] sm:$0xf] %v1035
    %1164 = vst [vmem:[#allocation2 + $0xc4] sm:$0xf] %v1036
    %1165 = vst [vmem:[#allocation2 + $0xc8] sm:$0xf] %v1037
    %1166 = vst [vmem:[#allocation2 + $0xcc] sm:$0xf] %v1038
    %1167 = vst [vmem:[#allocation2 + $0xd0] sm:$0xf] %v1039
    %1168 = vst [vmem:[#allocation2 + $0xd4] sm:$0xf] %v1040
    %1169 = vst [vmem:[#allocation2 + $0xd8] sm:$0xf] %v1041
    %1170 = vst [vmem:[#allocation2 + $0xdc] sm:$0xf] %v1042
    %1171 = vst [vmem:[#allocation2 + $0xe0] sm:$0xf] %v1043
    %1172 = vst [vmem:[#allocation2 + $0xe4] sm:$0xf] %v1044
    %1173 = vst [vmem:[#allocation2 + $0xe8] sm:$0xf] %v1045
    %1174 = vst [vmem:[#allocation2 + $0xec] sm:$0xf] %v1046
    %1175 = vst [vmem:[#allocation2 + $0xf0] sm:$0xf] %v1047
    %1176 = vst [vmem:[#allocation2 + $0xf4] sm:$0xf] %v1048
    %1177 = vst [vmem:[#allocation2 + $0xf8] sm:$0xf] %v1049
    %1178 = vst [vmem:[#allocation2 + $0xfc] sm:$0xf] %v1050
    // Predicated region
    $region18: #{tpu_custom_call.1} parent=1 // pred_check
      _
    $region19: #{tpu_custom_call.1} parent=1 // pred_check_branch
      %1180 = sbr.rel (0) target = $region21
    $region20: #{tpu_custom_call.1} parent=1 // pred_region
      %s1182 = ssub.s32 4096, 4096
      %1183 = vsyncadd [#allocation3], %s1182
      %s1184 = sshll.u32 [#allocation2], 4
      %s1185 = int_to_ptr.vmem [resolvable:$true] %s1184
      %1190 = dma.vmem_to_hbm [thread:$0]  %s1185, 4096, %s4, [#allocation3], 64, 64, 4
    $region21: #{tpu_custom_call.1} parent=1 // pred_fallthru
      _
    // Predicated region
    $region22: #{tpu_custom_call.1} parent=1 // pred_check
      _
    $region23: #{tpu_custom_call.1} parent=1 // pred_check_branch
      %1192 = sbr.rel (0) target = $region25
    $region24: #{tpu_custom_call.1} parent=1 // pred_region
      %1193 = dma.done [#allocation3], 4096
    $region25: #{tpu_custom_call.1} parent=1 // pred_fallthru
      _
    %1194 = vsyncpa [#allocation3], 1

</llo_original>
